<compile_context>
chip_gen: v7x
topology: tpu7x:2x2x1
jax: 0.10.0
libtpu: 0.0.40
codegen_flags: <defaults>
</compile_context>

<pallas_src>
import functools

import jax
import jax.numpy as jnp
from jax.experimental import pallas as pl
from jax.experimental.pallas import tpu as pltpu

_LANE = 128


# --------------------------------------------------------------------------- #
# Small helpers
# --------------------------------------------------------------------------- #
def _vmem_limit_bytes():
    """Chip-aware VMEM budget: ~48 MiB on v7x (64 MiB physical), ~96 MiB on v5e/v6e."""
    try:
        cap = int(pltpu.get_tpu_info().vmem_capacity_bytes)
    except Exception:  # conservative fallback if the query is unavailable
        cap = 64 * 1024 * 1024
    return int(min(cap * 3 // 4, 96 * 1024 * 1024))


def _round_up(x, m):
    return ((x + m - 1) // m) * m


def _pick_l_tile(lp, max_len=2048):
    """Largest multiple of 128 <= max_len that divides lp (lp is a multiple of 128)."""
    m = lp // _LANE
    for d in range(max(1, min(m, max_len // _LANE)), 0, -1):
        if m % d == 0:
            return d * _LANE
    return _LANE


# --------------------------------------------------------------------------- #
# Kernels
# --------------------------------------------------------------------------- #
def _conv_stats_kernel(x_ref, w_ref, y_ref, stats_ref, *,
                       L, Lp, K, dilation, pad, identity_res):
    """Per-sample block (NCL layout, length on the 128-lane axis).

    x_ref    : (1, Cin, L)    f32   raw input (no wrapper pad / cast)
    w_ref    : (Cout, K*Cin)  bf16  fused conv (+ folded 1x1 residual) weights
    y_ref    : (1, Cout, Lp)  bf16  pre-norm activation, lane-padded to Lp
    stats_ref: (1, Cout, 2)   f32   per-sample [sum, sum-of-squares] over valid L
    """
    Cin = x_ref.shape[1]
    x_f32 = x_ref[0]                                     # (Cin, L) f32
    x_bf = x_f32.astype(jnp.bfloat16)                    # cast happens in-kernel

    # In-register zero halo + lane padding: widths  pad | L | pad + (Lp - L).
    parts = []
    if pad > 0:
        parts.append(jnp.zeros((Cin, pad), jnp.bfloat16))
    parts.append(x_bf)
    rpad = pad + Lp - L
    if rpad > 0:
        parts.append(jnp.zeros((Cin, rpad), jnp.bfloat16))
    x_wide = jnp.concatenate(parts, axis=-1) if len(parts) > 1 else x_bf

    # K statically-shifted views stacked on the contraction axis -> one deep MXU matmul.
    taps = [x_wide[:, t * dilation: t * dilation + Lp] for t in range(K)]
    operand = jnp.concatenate(taps, axis=0) if K > 1 else taps[0]     # (K*Cin, Lp) bf16
    acc = jnp.dot(w_ref[...], operand,
                  preferred_element_type=jnp.float32)                 # (Cout, Lp) f32

    if identity_res:
        # Exact f32 identity residual (Cin == Cout), as in PyTorch.
        if Lp > L:
            x_res = jnp.concatenate(
                [x_f32, jnp.zeros((Cin, Lp - L), jnp.float32)], axis=-1)
        else:
            x_res = x_f32
        acc = acc + x_res

    y_ref[0] = acc.astype(jnp.bfloat16)                  # lane-dense bf16 store

    # Per-sample BN partial statistics (mask out the Lp - L lane-padding columns).
    col = jax.lax.broadcasted_iota(jnp.int32, (1, Lp), 1)
    valid = (col < L).astype(jnp.float32)
    s = jnp.sum(acc * valid, axis=-1, keepdims=True)             # (Cout, 1)
    sq = jnp.sum(acc * acc * valid, axis=-1, keepdims=True)      # (Cout, 1)
    stats_ref[0] = jnp.concatenate([s, sq], axis=-1)             # (Cout, 2)


def _bn_relu_kernel(y_ref, scale_ref, shift_ref, o_ref):
    """o = max(y * scale + shift, 0);  y bf16 in, o f32 out, (1, Cout, L_TILE) blocks."""
    y = y_ref[0].astype(jnp.float32)
    o_ref[0] = jnp.maximum(y * scale_ref[...] + shift_ref[...], 0.0)


# --------------------------------------------------------------------------- #
# Parameter preparation (plain JAX, fused by XLA)
# --------------------------------------------------------------------------- #
def _prepare_weights(w_conv, w_res):
    """(Cout, Cin, K) conv weights (+ optional (Cout, Cin, 1) residual 1x1 folded into
    the centre tap) -> fused (Cout, K*Cin) bf16 layout matching the in-kernel operand
    (contraction row index = t * Cin + c)."""
    Cout, Cin, K = w_conv.shape
    w_taps = jnp.transpose(w_conv, (2, 0, 1)).astype(jnp.float32)     # (K, Cout, Cin)
    if w_res is not None:
        w_taps = w_taps.at[(K - 1) // 2].add(w_res[:, :, 0].astype(jnp.float32))
    w_fused = jnp.transpose(w_taps, (1, 0, 2)).reshape(Cout, K * Cin)
    return w_fused.astype(jnp.bfloat16)


# --------------------------------------------------------------------------- #
# Forward pass
# --------------------------------------------------------------------------- #
def tcn_block_forward(x, params, *, kernel_size, dilation, eps=1e-5):
    """x: (N, Cin, L) float32 in PyTorch NCL layout.  Returns (N, Cout, L) float32.

    The conv / residual biases are accepted for API parity but are not used: train-mode
    BatchNorm subtracts the per-channel batch mean, so any per-channel constant added
    before the norm cancels exactly in the forward output.
    """
    w_conv, _b_conv, w_res, _b_res, gamma, beta = params
    N, Cin, L = x.shape
    Cout, Cin_w, K = w_conv.shape
    assert K == kernel_size and Cin_w == Cin
    pad = dilation * (K - 1) // 2
    if L + 2 * pad - dilation * (K - 1) != L:
        # PyTorch itself would fail on the `x + residual` add in this case.
        raise ValueError("TCNBlock requires same-length output "
                         "(dilation * (kernel_size - 1) must be even).")
    if w_res is None and Cin != Cout:
        raise ValueError("identity residual path requires in_channels == out_channels")

    Lp = _round_up(L, _LANE)          # lane-dense padded length (multiple of 128)
    l_tile = _pick_l_tile(Lp)         # kernel-2 length tile
    vmem_limit = _vmem_limit_bytes()

    w_fused = _prepare_weights(w_conv, w_res)                  # (Cout, K*Cin) bf16

    # ---- kernel 1: dilated conv (+ residual) + per-sample BN partial stats --------
    # TODO(synk): for very long sequences (L >~ 8-16K at Cout >~ 128) also tile the
    # length axis here — grid (N, L//L_TILE) with an overlapping halo window, via
    # pl.Element element offsets on a pad-aligned input or a manually double-buffered
    # pltpu.make_async_copy from a pl.ANY ref — so per-step VMEM stays bounded on v7x
    # (64 MiB/TC).  Typical MSTGAT window lengths fit comfortably without it.
    kern1 = functools.partial(
        _conv_stats_kernel, L=L, Lp=Lp, K=K, dilation=dilation, pad=pad,
        identity_res=(w_res is None))
    cost1 = pl.CostEstimate(
        flops=2 * N * Cout * K * Cin * L,
        transcendentals=0,
        bytes_accessed=(N * Cin * L * 4 + Cout * K * Cin * 2
                        + N * Cout * Lp * 2 + N * Cout * 2 * 4))
    y_pre, stats = pl.pallas_call(
        kern1,
        out_shape=(jax.ShapeDtypeStruct((N, Cout, Lp), jnp.bfloat16),
                   jax.ShapeDtypeStruct((N, Cout, 2), jnp.float32)),
        grid=(N,),
        in_specs=[pl.BlockSpec((1, Cin, L), lambda n: (n, 0, 0)),
                  pl.BlockSpec((Cout, K * Cin), lambda n: (0, 0))],
        out_specs=(pl.BlockSpec((1, Cout, Lp), lambda n: (n, 0, 0)),
                   pl.BlockSpec((1, Cout, 2), lambda n: (n, 0, 0))),
        compiler_params=pltpu.CompilerParams(
            dimension_semantics=("parallel",), vmem_limit_bytes=vmem_limit),
        cost_estimate=cost1,
    )(x, w_fused)

    # ---- tiny glue: finish train-mode BN statistics, fold into scale/shift ---------
    cnt = jnp.float32(N * L)
    mean = jnp.sum(stats[:, :, 0], axis=0) / cnt                        # (Cout,)
    var = jnp.maximum(jnp.sum(stats[:, :, 1], axis=0) / cnt - mean * mean, 0.0)
    inv_std = jax.lax.rsqrt(var + eps)
    g = gamma.astype(jnp.float32)
    scale = (g * inv_std).reshape(Cout, 1)
    shift = (beta.astype(jnp.float32) - mean * g * inv_std).reshape(Cout, 1)

    # ---- kernel 2: BN affine + ReLU, tiled over (N, L), lane-dense blocks ----------
    n_lt = Lp // l_tile
    cost2 = pl.CostEstimate(
        flops=2 * N * Cout * Lp, transcendentals=0,
        bytes_accessed=N * Cout * Lp * (2 + 4) + 2 * Cout * 4)
    out_padded = pl.pallas_call(
        _bn_relu_kernel,
        out_shape=jax.ShapeDtypeStruct((N, Cout, Lp), jnp.float32),
        grid=(N, n_lt),
        in_specs=[pl.BlockSpec((1, Cout, l_tile), lambda n, j: (n, 0, j)),
                  pl.BlockSpec((Cout, 1), lambda n, j: (0, 0)),
                  pl.BlockSpec((Cout, 1), lambda n, j: (0, 0))],
        out_specs=pl.BlockSpec((1, Cout, l_tile), lambda n, j: (n, 0, j)),
        compiler_params=pltpu.CompilerParams(
            dimension_semantics=("parallel", "parallel"),
            vmem_limit_bytes=vmem_limit),
        cost_estimate=cost2,
    )(y_pre, scale, shift)

    return out_padded if Lp == L else out_padded[..., :L]


# --------------------------------------------------------------------------- #
# References
# --------------------------------------------------------------------------- #
def reference_forward(x, params, *, kernel_size, dilation, eps=1e-5):
    """Pure-f32 JAX reference matching PyTorch TCNBlock.forward (train-mode BN)."""
    w_conv, b_conv, w_res, b_res, gamma, beta = params
    pad = dilation * (kernel_size - 1) // 2
    y = jax.lax.conv_general_dilated(
        x, w_conv, window_strides=(1,), padding=[(pad, pad)],
        rhs_dilation=(dilation,), dimension_numbers=("NCH", "OIH", "NCH"),
        precision=jax.lax.Precision.HIGHEST)
    y = y + b_conv[None, :, None]
    if w_res is not None:
        res = jax.lax.conv_general_dilated(
            x, w_res, window_strides=(1,), padding=[(0, 0)],
            dimension_numbers=("NCH", "OIH", "NCH"),
            precision=jax.lax.Precision.HIGHEST) + b_res[None, :, None]
    else:
        res = x
    z = y + res
    mean = jnp.mean(z, axis=(0, 2), keepdims=True)
    var = jnp.mean((z - mean) ** 2, axis=(0, 2), keepdims=True)
    zn = (z - mean) / jnp.sqrt(var + eps)
    zn = zn * gamma[None, :, None] + beta[None, :, None]
    return jnp.maximum(zn, 0.0)


def matched_reference(x, params, *, kernel_size, dilation, eps=1e-5):
    """Plain-JAX math replicating the kernel's quantisation choices (bf16 inputs /
    weights / intermediate, f32 accumulation & statistics, bias-free path) for a tight
    check of the kernel plumbing."""
    w_conv, _b_conv, w_res, _b_res, gamma, beta = params
    N, Cin, L = x.shape
    Cout, _, K = w_conv.shape
    pad = dilation * (K - 1) // 2
    Lp = _round_up(L, _LANE)
    w_fused = _prepare_weights(w_conv, w_res)                          # (Cout, K*Cin)
    x_wide = jnp.pad(x.astype(jnp.bfloat16),
                     ((0, 0), (0, 0), (pad, pad + Lp - L)))
    taps = [x_wide[:, :, t * dilation: t * dilation + Lp] for t in range(K)]
    operand = jnp.concatenate(taps, axis=1)                            # (N, K*Cin, Lp)
    acc = jnp.einsum("ok,nkl->nol", w_fused, operand,
                     preferred_element_type=jnp.float32)               # (N, Cout, Lp)
    if w_res is None:
        acc = acc + jnp.pad(x, ((0, 0), (0, 0), (0, Lp - L)))
    valid = jnp.arange(Lp) < L
    cnt = jnp.float32(N * L)
    mean = jnp.sum(jnp.where(valid, acc, 0.0), axis=(0, 2)) / cnt
    var = jnp.maximum(
        jnp.sum(jnp.where(valid, acc * acc, 0.0), axis=(0, 2)) / cnt - mean * mean, 0.0)
    inv_std = jax.lax.rsqrt(var + eps)
    scale = gamma * inv_std
    shift = beta - mean * scale
    acc_q = acc.astype(jnp.bfloat16).astype(jnp.float32)   # kernel stores y_pre as bf16
    y = jnp.maximum(acc_q * scale[None, :, None] + shift[None, :, None], 0.0)
    return y[..., :L]


# --------------------------------------------------------------------------- #
if __name__ == "__main__":
    configs = [
        dict(N=2, Cin=4, Cout=8, L=16, K=3, dil=2),   # 1x1 residual conv path
        dict(N=2, Cin=8, Cout=8, L=16, K=3, dil=1),   # identity residual path (exact f32)
    ]
    key = jax.random.PRNGKey(0)
    for cfg in configs:
        N, Cin, Cout = cfg["N"], cfg["Cin"], cfg["Cout"]
        L, K, D = cfg["L"], cfg["K"], cfg["dil"]
        key, kx, kw, kb, kwr, kbr, kg, kbe = jax.random.split(key, 8)
        x = jax.random.normal(kx, (N, Cin, L), jnp.float32)

        w_conv = 0.3 * jax.random.normal(kw, (Cout, Cin, K), jnp.float32)
        b_conv = 0.1 * jax.random.normal(kb, (Cout,), jnp.float32)
        if Cin != Cout:
            w_res = 0.3 * jax.random.normal(kwr, (Cout, Cin, 1), jnp.float32)
            b_res = 0.1 * jax.random.normal(kbr, (Cout,), jnp.float32)
        else:
            w_res, b_res = None, None
        gamma = 1.0 + 0.1 * jax.random.normal(kg, (Cout,), jnp.float32)
        beta = 0.1 * jax.random.normal(kbe, (Cout,), jnp.float32)
        params = (w_conv, b_conv, w_res, b_res, gamma, beta)

        fwd = jax.jit(functools.partial(tcn_block_forward, kernel_size=K, dilation=D))
        out = jax.block_until_ready(fwd(x, params))
        assert out.shape == (N, Cout, L), out.shape

        # Tight check: identical bf16-quantised, bias-free math in plain JAX.
        ref_tight = matched_reference(x, params, kernel_size=K, dilation=D)
        err_t = float(jnp.max(jnp.abs(out - ref_tight)))
        assert err_t < 2e-2, f"tight max err {err_t} (cfg {cfg})"

        # Semantic check against pure-f32 PyTorch-equivalent math (bf16 tolerance).
        ref_sem = reference_forward(x, params, kernel_size=K, dilation=D)
        err_s = float(jnp.max(jnp.abs(out - ref_sem)))
        assert err_s < 5e-2, f"semantic max err {err_s} (cfg {cfg})"

    print("KERNEL_OK")
</pallas_src>

<mosaic_0001>
module attributes {stable_mosaic.version = 11 : i64} {
  func.func @_conv_stats_kernel(%arg0: i32, %arg1: memref<1x4x16xf32, #tpu.memory_space<vmem>>, %arg2: memref<8x12xbf16, #tpu.memory_space<vmem>>, %arg3: memref<1x8x128xbf16, #tpu.memory_space<vmem>>, %arg4: memref<1x8x2xf32, #tpu.memory_space<vmem>>) attributes {dimension_semantics = [#tpu.dimension_semantics<parallel>], iteration_bounds = array<i64: 2>, scalar_prefetch = 0 : i64, scratch_operands = 0 : i64, tpu.core_type = #tpu.core_type<tc>, window_params = [{transform_indices = @transform_0, window_bounds = array<i64: 1, 4, 16>}, {pipeline_mode = #tpu.pipeline_mode<synchronous>, transform_indices = @transform_1, window_bounds = array<i64: 8, 12>}, {transform_indices = @transform_2, window_bounds = array<i64: 1, 8, 128>}, {transform_indices = @transform_3, window_bounds = array<i64: 1, 8, 2>}]} {
    %c0 = arith.constant 0 : index
    %c0_0 = arith.constant 0 : index
    %c0_1 = arith.constant 0 : index
    %0 = vector.load %arg1[%c0, %c0_0, %c0_1] : memref<1x4x16xf32, #tpu.memory_space<vmem>>, vector<1x4x16xf32>
    %1 = vector.shape_cast %0 : vector<1x4x16xf32> to vector<4x16xf32>
    %2 = arith.truncf %1 : vector<4x16xf32> to vector<4x16xbf16>
    %cst = arith.constant 0.000000e+00 : bf16
    %3 = vector.broadcast %cst : bf16 to vector<4x2xbf16>
    %cst_2 = arith.constant 0.000000e+00 : bf16
    %4 = vector.broadcast %cst_2 : bf16 to vector<4x114xbf16>
    %5 = tpu.concatenate %3, %2, %4 in 1 : vector<4x2xbf16>, vector<4x16xbf16>, vector<4x114xbf16> -> vector<4x132xbf16>
    %6 = vector.extract_strided_slice %5 {offsets = [0, 0], sizes = [4, 128], strides = [1, 1]} : vector<4x132xbf16> to vector<4x128xbf16>
    %7 = vector.extract_strided_slice %5 {offsets = [0, 2], sizes = [4, 128], strides = [1, 1]} : vector<4x132xbf16> to vector<4x128xbf16>
    %8 = vector.extract_strided_slice %5 {offsets = [0, 4], sizes = [4, 128], strides = [1, 1]} : vector<4x132xbf16> to vector<4x128xbf16>
    %9 = tpu.concatenate %6, %7, %8 in 0 : vector<4x128xbf16>, vector<4x128xbf16>, vector<4x128xbf16> -> vector<12x128xbf16>
    %c0_3 = arith.constant 0 : index
    %c0_4 = arith.constant 0 : index
    %10 = vector.load %arg2[%c0_3, %c0_4] : memref<8x12xbf16, #tpu.memory_space<vmem>>, vector<8x12xbf16>
    %cst_5 = arith.constant dense<0.000000e+00> : vector<8x128xf32>
    %11 = tpu.matmul %10, %9, %cst_5 {dimension_numbers = #tpu.dot_dimension_numbers<[1], [0], [0], [1], [0, 0, 1, 1], [], []>} : vector<8x12xbf16>, vector<12x128xbf16>, vector<8x128xf32> -> vector<8x128xf32>
    %12 = arith.truncf %11 : vector<8x128xf32> to vector<8x128xbf16>
    %c0_6 = arith.constant 0 : index
    %c0_7 = arith.constant 0 : index
    %c0_8 = arith.constant 0 : index
    %13 = vector.load %arg3[%c0_6, %c0_7, %c0_8] : memref<1x8x128xbf16, #tpu.memory_space<vmem>>, vector<1x8x128xbf16>
    %14 = vector.shape_cast %13 : vector<1x8x128xbf16> to vector<8x128xbf16>
    %15 = vector.shape_cast %12 : vector<8x128xbf16> to vector<1x8x128xbf16>
    tpu.vector_store %arg3[%c0_6, %c0_7, %c0_8], %15 {strides = array<i32>} : memref<1x8x128xbf16, #tpu.memory_space<vmem>>, vector<1x8x128xbf16>,
    %16 = tpu.iota {dimensions = array<i32: 1>} : vector<1x128xi32>
    %c16_i32 = arith.constant 16 : i32
    %17 = vector.broadcast %c16_i32 : i32 to vector<1x128xi32>
    %18 = arith.cmpi slt, %16, %17 : vector<1x128xi32>
    %19 = arith.extui %18 : vector<1x128xi1> to vector<1x128xi32>
    %20 = arith.sitofp %19 : vector<1x128xi32> to vector<1x128xf32>
    %21 = vector.broadcast %20 : vector<1x128xf32> to vector<8x128xf32>
    %22 = arith.mulf %11, %21 : vector<8x128xf32>
    %cst_9 = arith.constant dense<0.000000e+00> : vector<8xf32>
    %23 = vector.multi_reduction <add>, %22, %cst_9 [1] : vector<8x128xf32> to vector<8xf32>
    %24 = vector.shape_cast %23 : vector<8xf32> to vector<8x1xf32>
    %25 = arith.mulf %11, %11 : vector<8x128xf32>
    %26 = vector.broadcast %20 : vector<1x128xf32> to vector<8x128xf32>
    %27 = arith.mulf %25, %26 : vector<8x128xf32>
    %cst_10 = arith.constant dense<0.000000e+00> : vector<8xf32>
    %28 = vector.multi_reduction <add>, %27, %cst_10 [1] : vector<8x128xf32> to vector<8xf32>
    %29 = vector.shape_cast %28 : vector<8xf32> to vector<8x1xf32>
    %30 = tpu.concatenate %24, %29 in 1 : vector<8x1xf32>, vector<8x1xf32> -> vector<8x2xf32>
    %c0_11 = arith.constant 0 : index
    %c0_12 = arith.constant 0 : index
    %c0_13 = arith.constant 0 : index
    %31 = vector.load %arg4[%c0_11, %c0_12, %c0_13] : memref<1x8x2xf32, #tpu.memory_space<vmem>>, vector<1x8x2xf32>
    %32 = vector.shape_cast %31 : vector<1x8x2xf32> to vector<8x2xf32>
    %33 = vector.shape_cast %30 : vector<8x2xf32> to vector<1x8x2xf32>
    tpu.vector_store %arg4[%c0_11, %c0_12, %c0_13], %33 {strides = array<i32>} : memref<1x8x2xf32, #tpu.memory_space<vmem>>, vector<1x8x2xf32>,
    return
  }
  func.func @transform_0(%arg0: i32) -> (i32, i32, i32) {
    %c0_i32 = arith.constant 0 : i32
    %c0_i32_0 = arith.constant 0 : i32
    %c0_i32_1 = arith.constant 0 : i32
    return %arg0, %c0_i32, %c0_i32_0 : i32, i32, i32
  }
  func.func @transform_1(%arg0: i32) -> (i32, i32) {
    %c0_i32 = arith.constant 0 : i32
    %c0_i32_0 = arith.constant 0 : i32
    %c0_i32_1 = arith.constant 0 : i32
    return %c0_i32, %c0_i32_0 : i32, i32
  }
  func.func @transform_2(%arg0: i32) -> (i32, i32, i32) {
    %c0_i32 = arith.constant 0 : i32
    %c0_i32_0 = arith.constant 0 : i32
    %c0_i32_1 = arith.constant 0 : i32
    return %arg0, %c0_i32, %c0_i32_0 : i32, i32, i32
  }
  func.func @transform_3(%arg0: i32) -> (i32, i32, i32) {
    %c0_i32 = arith.constant 0 : i32
    %c0_i32_0 = arith.constant 0 : i32
    %c0_i32_1 = arith.constant 0 : i32
    return %arg0, %c0_i32, %c0_i32_0 : i32, i32, i32
  }
}

module attributes {stable_mosaic.version = 11 : i64} {
  func.func @_bn_relu_kernel(%arg0: i32, %arg1: i32, %arg2: memref<1x8x128xbf16, #tpu.memory_space<vmem>>, %arg3: memref<8x1xf32, #tpu.memory_space<vmem>>, %arg4: memref<8x1xf32, #tpu.memory_space<vmem>>, %arg5: memref<1x8x128xf32, #tpu.memory_space<vmem>>) attributes {dimension_semantics = [#tpu.dimension_semantics<parallel>, #tpu.dimension_semantics<parallel>], iteration_bounds = array<i64: 2, 1>, scalar_prefetch = 0 : i64, scratch_operands = 0 : i64, tpu.core_type = #tpu.core_type<tc>, window_params = [{transform_indices = @transform_0, window_bounds = array<i64: 1, 8, 128>}, {pipeline_mode = #tpu.pipeline_mode<synchronous>, transform_indices = @transform_1, window_bounds = array<i64: 8, 1>}, {pipeline_mode = #tpu.pipeline_mode<synchronous>, transform_indices = @transform_2, window_bounds = array<i64: 8, 1>}, {transform_indices = @transform_3, window_bounds = array<i64: 1, 8, 128>}]} {
    %c0 = arith.constant 0 : index
    %c0_0 = arith.constant 0 : index
    %c0_1 = arith.constant 0 : index
    %0 = vector.load %arg2[%c0, %c0_0, %c0_1] : memref<1x8x128xbf16, #tpu.memory_space<vmem>>, vector<1x8x128xbf16>
    %1 = vector.shape_cast %0 : vector<1x8x128xbf16> to vector<8x128xbf16>
    %2 = arith.extf %1 : vector<8x128xbf16> to vector<8x128xf32>
    %c0_2 = arith.constant 0 : index
    %c0_3 = arith.constant 0 : index
    %3 = vector.load %arg3[%c0_2, %c0_3] : memref<8x1xf32, #tpu.memory_space<vmem>>, vector<8x1xf32>
    %4 = vector.broadcast %3 : vector<8x1xf32> to vector<8x128xf32>
    %5 = arith.mulf %2, %4 : vector<8x128xf32>
    %c0_4 = arith.constant 0 : index
    %c0_5 = arith.constant 0 : index
    %6 = vector.load %arg4[%c0_4, %c0_5] : memref<8x1xf32, #tpu.memory_space<vmem>>, vector<8x1xf32>
    %7 = vector.broadcast %6 : vector<8x1xf32> to vector<8x128xf32>
    %8 = arith.addf %5, %7 : vector<8x128xf32>
    %cst = arith.constant 0.000000e+00 : f32
    %9 = vector.broadcast %cst : f32 to vector<8x128xf32>
    %10 = arith.maximumf %8, %9 : vector<8x128xf32>
    %c0_6 = arith.constant 0 : index
    %c0_7 = arith.constant 0 : index
    %c0_8 = arith.constant 0 : index
    %11 = vector.load %arg5[%c0_6, %c0_7, %c0_8] : memref<1x8x128xf32, #tpu.memory_space<vmem>>, vector<1x8x128xf32>
    %12 = vector.shape_cast %11 : vector<1x8x128xf32> to vector<8x128xf32>
    %13 = vector.shape_cast %10 : vector<8x128xf32> to vector<1x8x128xf32>
    tpu.vector_store %arg5[%c0_6, %c0_7, %c0_8], %13 {strides = array<i32>} : memref<1x8x128xf32, #tpu.memory_space<vmem>>, vector<1x8x128xf32>,
    return
  }
  func.func @transform_0(%arg0: i32, %arg1: i32) -> (i32, i32, i32) {
    %c0_i32 = arith.constant 0 : i32
    %c0_i32_0 = arith.constant 0 : i32
    return %arg0, %c0_i32, %arg1 : i32, i32, i32
  }
  func.func @transform_1(%arg0: i32, %arg1: i32) -> (i32, i32) {
    %c0_i32 = arith.constant 0 : i32
    %c0_i32_0 = arith.constant 0 : i32
    %c0_i32_1 = arith.constant 0 : i32
    return %c0_i32, %c0_i32_0 : i32, i32
  }
  func.func @transform_2(%arg0: i32, %arg1: i32) -> (i32, i32) {
    %c0_i32 = arith.constant 0 : i32
    %c0_i32_0 = arith.constant 0 : i32
    %c0_i32_1 = arith.constant 0 : i32
    return %c0_i32, %c0_i32_0 : i32, i32
  }
  func.func @transform_3(%arg0: i32, %arg1: i32) -> (i32, i32, i32) {
    %c0_i32 = arith.constant 0 : i32
    %c0_i32_0 = arith.constant 0 : i32
    return %arg0, %c0_i32, %arg1 : i32, i32, i32
  }
}

</mosaic_0001>

<llo_original>
// kernel: tcn_block_forward.2
$region0: #{tcn_block_forward.2}
  #allocation0 [shape = 'u32[]', space=smem, size = 0x4, offset = 0x4, fixed_abs, tag = 'smem constant byte address 0x4 - core index']
  #allocation1 [shape = 'u32[144,128]{1,0:T(1,128)}', space=vmem, size = 0x12000, scoped, tag = 'internal scratch']
  %s0 = inlined_call_operand.vmem [shape: f32[2,4,16], index: 0, kind: input, shape index: {}]
  %s1 = inlined_call_operand.vmem [shape: bf16[8,12], index: 1, kind: input, shape index: {}]
  %s2 = inlined_call_operand.vmem [shape: bf16[2,8,128], index: 2, kind: output, shape index: {0}]
  %s3 = inlined_call_operand.vmem [shape: f32[2,8,2], index: 3, kind: output, shape index: {1}]
  %4 = xla_tuple %s2, %s3
  %s5 = sld [smem:[#allocation0]]
  $region49: #{tcn_block_forward.2} parent=0
    _
  %s7 = ssub.s32 1, %s5
  %s8 = scalar_select 0, %s7, %s5
  loop: start=0, step=1, limit=4
  $region2: #{tcn_block_forward.2} parent=0 // loop_pre_header
    _
  $region3: #{tcn_block_forward.2} parent=0 // loop_header
    %s10 = sphi 0, %s14
    %p11 = scmp.ge.s32.totalorder %s10, 4
    %s20 = sphi 0, %s22
    %s23 = sphi 0, %s20
    %s24 = sphi 0, %s23
    %s40 = sphi 0, %s24
    %s44 = sphi 0, %s44
    %s46 = sphi 0, %s44
    %s47 = sphi 0, %s46
    %s61 = sphi 0, %s47
    %s67 = sphi 0, %s69
    %s70 = sphi 0, %s67
    %s71 = sphi 0, %s70
    %s87 = sphi 0, %s71
    %s93 = sphi 0, %s95
    %s96 = sphi 0, %s93
    %s97 = sphi 0, %s96
    %s113 = sphi 0, %s97
  $region4: #{tcn_block_forward.2} parent=0 // loop_header_branch
    %13 = sbr.rel (%p11) target = $region8
  $region5: #{tcn_block_forward.2} parent=0 // loop_body
    %s15 = ssub.s32 %s10, 1
    %s16 = ssub.s32 %s10, 2
    %s17 = sadd.s32 %s10, 1
    %s18 = ssub.s32 %s10, %s17
    %p19 = scmp.eq.s32.totalorder %s18, 0
    %s21 = sadd.s32 %s20, 1
    %s22 = scalar_select %p19, %s20, %s21
    %p25 = pneg %p19
    %p26 = scmp.eq.s32.totalorder %s10, 1
    %p27 = por %p25, %p26
    %p28 = scmp.ne.s32.totalorder %s20, %s23
    %p29 = scmp.eq.s32.totalorder %s10, 0
    %p30 = por %p28, %p29
    %p31 = scmp.ne.s32.totalorder %s20, %s23
    %p32 = scmp.eq.s32.totalorder %s15, 1
    %p33 = por %p31, %p32
    %p34 = scmp.ne.s32.totalorder %s23, %s24
    %p35 = scmp.eq.s32.totalorder %s15, 0
    %p36 = por %p34, %p35
    %p37 = scmp.ne.s32.totalorder %s23, %s24
    %p38 = scmp.eq.s32.totalorder %s16, 1
    %p39 = por %p37, %p38
    %p41 = scmp.ne.s32.totalorder %s24, %s40
    %p42 = scmp.eq.s32.totalorder %s16, 0
    %p43 = por %p41, %p42
    %s45 = sadd.s32 %s44, 1
    %p48 = scmp.eq.s32.totalorder %s10, 1
    %p49 = scmp.ne.s32.totalorder %s44, %s46
    %p50 = scmp.eq.s32.totalorder %s10, 0
    %p51 = por %p49, %p50
    %p52 = scmp.ne.s32.totalorder %s44, %s46
    %p53 = scmp.eq.s32.totalorder %s15, 1
    %p54 = por %p52, %p53
    %p55 = scmp.ne.s32.totalorder %s46, %s47
    %p56 = scmp.eq.s32.totalorder %s15, 0
    %p57 = por %p55, %p56
    %p58 = scmp.ne.s32.totalorder %s46, %s47
    %p59 = scmp.eq.s32.totalorder %s16, 1
    %p60 = por %p58, %p59
    %p62 = scmp.ne.s32.totalorder %s47, %s61
    %p63 = scmp.eq.s32.totalorder %s16, 0
    %p64 = por %p62, %p63
    %s65 = ssub.s32 %s10, %s17
    %p66 = scmp.eq.s32.totalorder %s65, 0
    %s68 = sadd.s32 %s67, 1
    %s69 = scalar_select %p66, %s67, %s68
    %p72 = pneg %p66
    %p73 = scmp.eq.s32.totalorder %s10, 1
    %p74 = por %p72, %p73
    %p75 = scmp.ne.s32.totalorder %s67, %s70
    %p76 = scmp.eq.s32.totalorder %s10, 0
    %p77 = por %p75, %p76
    %p78 = scmp.ne.s32.totalorder %s67, %s70
    %p79 = scmp.eq.s32.totalorder %s15, 1
    %p80 = por %p78, %p79
    %p81 = scmp.ne.s32.totalorder %s70, %s71
    %p82 = scmp.eq.s32.totalorder %s15, 0
    %p83 = por %p81, %p82
    %p84 = scmp.ne.s32.totalorder %s70, %s71
    %p85 = scmp.eq.s32.totalorder %s16, 1
    %p86 = por %p84, %p85
    %p88 = scmp.ne.s32.totalorder %s71, %s87
    %p89 = scmp.eq.s32.totalorder %s16, 0
    %p90 = por %p88, %p89
    %s91 = ssub.s32 %s10, %s17
    %p92 = scmp.eq.s32.totalorder %s91, 0
    %s94 = sadd.s32 %s93, 1
    %s95 = scalar_select %p92, %s93, %s94
    %p98 = pneg %p92
    %p99 = scmp.eq.s32.totalorder %s10, 1
    %p100 = por %p98, %p99
    %p101 = scmp.ne.s32.totalorder %s93, %s96
    %p102 = scmp.eq.s32.totalorder %s10, 0
    %p103 = por %p101, %p102
    %p104 = scmp.ne.s32.totalorder %s93, %s96
    %p105 = scmp.eq.s32.totalorder %s15, 1
    %p106 = por %p104, %p105
    %p107 = scmp.ne.s32.totalorder %s96, %s97
    %p108 = scmp.eq.s32.totalorder %s15, 0
    %p109 = por %p107, %p108
    %p110 = scmp.ne.s32.totalorder %s96, %s97
    %p111 = scmp.eq.s32.totalorder %s16, 1
    %p112 = por %p110, %p111
    %p114 = scmp.ne.s32.totalorder %s97, %s113
    %p115 = scmp.eq.s32.totalorder %s16, 0
    %p116 = por %p114, %p115
    %p117 = scmp.le.s32.totalorder 1, %s10
    %p118 = scmp.lt.s32.totalorder %s10, 3
    %p119 = pnand %p117, %p118
    %p120 = pneg %p119
    // Predicated region
    $region9: #{tcn_block_forward.2} parent=5 // pred_check
      _
    $region10: #{tcn_block_forward.2} parent=5 // pred_check_branch
      %122 = sbr.rel (%p119) target = $region12
    $region11: #{tcn_block_forward.2} parent=5 // pred_region
      %s123 = ssub.s32 %s10, 1
      // Predicated region
      $region13: #{tcn_block_forward.2} parent=11 // pred_check
        %p124 = pneg %p57
      $region14: #{tcn_block_forward.2} parent=11 // pred_check_branch
        %126 = sbr.rel (%p124) target = $region16
      $region15: #{tcn_block_forward.2} parent=11 // pred_region
        _
      $region16: #{tcn_block_forward.2} parent=11 // pred_fallthru
        _
    $region12: #{tcn_block_forward.2} parent=5 // pred_fallthru
      _
    %p127 = scmp.lt.s32.totalorder %s10, 2
    // Predicated region
    $region17: #{tcn_block_forward.2} parent=5 // pred_check
      %p128 = pneg %p127
    $region18: #{tcn_block_forward.2} parent=5 // pred_check_branch
      %130 = sbr.rel (%p128) target = $region20
    $region19: #{tcn_block_forward.2} parent=5 // pred_region
      // Predicated region
      $region21: #{tcn_block_forward.2} parent=19 // pred_check
        %p131 = pneg %p30
      $region22: #{tcn_block_forward.2} parent=19 // pred_check_branch
        %133 = sbr.rel (%p131) target = $region24
      $region23: #{tcn_block_forward.2} parent=19 // pred_region
        %p134 = scmp.lt.s32.totalorder %s10, 1
        %s135 = scalar_select %p134, %s10, 1
        %s136 = smul.addr %s135, 4
        %s137 = scalar_lea.vmem %s0, %s136
      $region24: #{tcn_block_forward.2} parent=19 // pred_fallthru
        _
    $region20: #{tcn_block_forward.2} parent=5 // pred_fallthru
      _
    %p138 = scmp.le.s32.totalorder 1, %s10
    %p139 = scmp.lt.s32.totalorder %s10, 3
    %p140 = pnand %p138, %p139
    %p141 = pneg %p140
    // Predicated region
    $region25: #{tcn_block_forward.2} parent=5 // pred_check
      _
    $region26: #{tcn_block_forward.2} parent=5 // pred_check_branch
      %143 = sbr.rel (%p140) target = $region28
    $region27: #{tcn_block_forward.2} parent=5 // pred_region
      %s144 = ssub.s32 %s10, 1
      %p145 = scmp.lt.s32.totalorder %s15, 1
      %s146 = scalar_select %p145, %s15, 1
      %s147 = smul.addr %s146, 4
      %s148 = scalar_lea.vmem %s0, %s147
      %p149 = pneg %p36
      %p150 = pneg %p33
      %p151 = pneg %p57
      %p152 = pneg %p54
      %p153 = pneg %p83
      %p154 = pneg %p80
      %p155 = scmp.lt.s32.totalorder %s15, 1
      %s156 = scalar_select %p155, %s15, 1
      %s157 = smul.addr %s156, 4
      %s158 = scalar_lea.vmem %s2, %s157
      %p159 = pneg %p109
      %p160 = pneg %p106
      %p161 = scmp.lt.s32.totalorder %s15, 1
      %s162 = scalar_select %p161, %s15, 1
      %s163 = smul.addr %s162, 8
      %s164 = scalar_lea.vmem %s3, %s163
      %p165 = scmp.lt.s32.totalorder %s15, 1
      %s166 = scalar_select %p165, %s15, 1
      %s167 = smul.addr %s166, 4
      %s168 = scalar_lea.vmem %s0, %s167
      %p169 = scmp.lt.s32.totalorder %s15, 1
      %s170 = scalar_select %p169, %s15, 1
      %s171 = smul.addr %s170, 4
      %s172 = scalar_lea.vmem %s2, %s171
      %p173 = scmp.lt.s32.totalorder %s15, 1
      %s174 = scalar_select %p173, %s15, 1
      %s175 = smul.addr %s174, 8
      %s176 = scalar_lea.vmem %s3, %s175
      %v178 = vld [vmem:[%s168] sm:$0xf]
      %v179 = vpack.c.bf16 %v178, %v178
      %181 = vrot.lane.b32.xlu0 %v179, 2
      %v182 = vpop.permute.xlu0 %181
      %vm183 = vcmask 15360
      %v186 = vsel %vm183, 0, %v182
      %vm187 = vcmask 146432
      %v188 = vsel %vm187, %v186, 0
      %v191 = vrot.slane %v188, 6
      %v192 = vrot.slane 0, 6
      %193 = vrot.lane.b32.xlu0 %v191, 126
      %v194 = vpop.permute.xlu0 %193
      %195 = vrot.lane.b32.xlu0 %v192, 126
      %v196 = vpop.permute.xlu0 %195
      %vm197 = vcmask 1031168
      %v198 = vsel %vm197, %v194, %v196
      %v199 = vrot.slane %v188, 4
      %v200 = vrot.slane 0, 4
      %201 = vrot.lane.b32.xlu0 %v199, 124
      %v202 = vpop.permute.xlu0 %201
      %203 = vrot.lane.b32.xlu0 %v200, 124
      %v204 = vpop.permute.xlu0 %203
      %vm205 = vcmask 1014784
      %v206 = vsel %vm205, %v202, %v204
      %vm207 = vcmask 1041408
      %v209 = vsel %vm207, %v188, %v198
      %vm210 = vcmask 1043456
      %v212 = vsel %vm210, %v209, %v206
      %v213 = vld [vmem:[%s1] sm:$0xf]
      %vm214 = vcmask 97280
      %v216 = vsel %vm214, %v213, 0
      %vm218 = vcmask 1045504
      %v219 = vsel %vm218, %v212, 0
      %221 = vmatprep.subr.bf16.mxu0 0
      %222 = vmatpush1.bf16.msra.mxu0 %v219
      %223 = vmatprep.subr.bf16.mxu0 0
      %224 = vmatpush1.bf16.msra.mxu0 0
      %225 = vmatprep.subr.bf16.mxu0 0
      %226 = vmatpush1.bf16.msra.mxu0 0
      %227 = vmatprep.subr.bf16.mxu0 0
      %228 = vmatpush1.bf16.msra.mxu0 0
      %229 = vmatprep.subr.bf16.mxu0 0
      %230 = vmatpush1.bf16.msra.mxu0 0
      %231 = vmatprep.subr.bf16.mxu0 0
      %232 = vmatpush1.bf16.msra.mxu0 0
      %233 = vmatprep.subr.bf16.mxu0 0
      %234 = vmatpush1.bf16.msra.mxu0 0
      %235 = vmatprep.subr.bf16.mxu0 0
      %236 = vmatpush1.bf16.msra.mxu0 0
      %237 = vmatprep.subr.bf16.mxu0 0
      %238 = vmatpush1.bf16.msra.mxu0 0
      %239 = vmatprep.subr.bf16.mxu0 0
      %240 = vmatpush1.bf16.msra.mxu0 0
      %241 = vmatprep.subr.bf16.mxu0 0
      %242 = vmatpush1.bf16.msra.mxu0 0
      %243 = vmatprep.subr.bf16.mxu0 0
      %244 = vmatpush1.bf16.msra.mxu0 0
      %245 = vmatprep.subr.bf16.mxu0 0
      %246 = vmatpush1.bf16.msra.mxu0 0
      %247 = vmatprep.subr.bf16.mxu0 0
      %248 = vmatpush1.bf16.msra.mxu0 0
      %249 = vmatprep.subr.bf16.mxu0 0
      %250 = vmatpush1.bf16.msra.mxu0 0
      %251 = vmatprep.subr.bf16.mxu0 0
      %252 = vmatpush1.bf16.msra.mxu0 0
      %253 = vmatprep.mubr.bf16.mxu0 0
      %254 = vmatmul.mubr.bf16.gmra.mrb[0].mxu0 %v216
      %v255 = vpop.f32.mrb[0].mxu0
      %v256 = vadd.f32 0.0, %v255
      %v257 = vpop.f32.mrb[0].mxu0
      %v258 = vpop.f32.mrb[0].mxu0
      %v259 = vpop.f32.mrb[0].mxu0
      %260 = vdwg.mxu0
      %v261 = vpack.c.bf16 %v256, %v256
      %262 = vst [vmem:[%s172] sm:$0xf] %v261
      %v263 = vlaneseq
      %v264 = vand.u32 %v263, 127
      %vm265 = vcmp.lt.s32.totalorder %v264, 16
      %v266 = vsel %vm265, 1, 0
      %v267 = vcvt.s32.f32 %v266
      %v268 = vmul.f32 %v256, %v267
      %269 = vadd.xlane.f32.xlu0 %v268
      %v270 = vpop.xlane.xlu0 %269
      %v271 = vmul.f32 %v256, %v256
      %v272 = vmul.f32 %v271, %v267
      %273 = vadd.xlane.f32.xlu0 %v272
      %v274 = vpop.xlane.xlu0 %273
      %vm275 = vcmask 7168
      %v276 = vsel %vm275, %v270, %v274
      %277 = vst.msk [vmem:[%s176] sm:$0xff] %vm183, %v276
      %p278 = scmp.lt.s32.totalorder %s15, 1
      %s279 = scalar_select %p278, %s15, 1
      %s280 = smul.addr %s279, 4
      %s281 = scalar_lea.vmem %s2, %s280
      %p282 = scmp.lt.s32.totalorder %s15, 1
      %s283 = scalar_select %p282, %s15, 1
      %s284 = smul.addr %s283, 8
      %s285 = scalar_lea.vmem %s3, %s284
      // Predicated region
      $region29: #{tcn_block_forward.2} parent=27 // pred_check
        %p286 = pneg %p80
      $region30: #{tcn_block_forward.2} parent=27 // pred_check_branch
        %288 = sbr.rel (%p286) target = $region32
      $region31: #{tcn_block_forward.2} parent=27 // pred_region
        _
      $region32: #{tcn_block_forward.2} parent=27 // pred_fallthru
        _
      // Predicated region
      $region33: #{tcn_block_forward.2} parent=27 // pred_check
        %p289 = pneg %p106
      $region34: #{tcn_block_forward.2} parent=27 // pred_check_branch
        %291 = sbr.rel (%p289) target = $region36
      $region35: #{tcn_block_forward.2} parent=27 // pred_region
        _
      $region36: #{tcn_block_forward.2} parent=27 // pred_fallthru
        _
    $region28: #{tcn_block_forward.2} parent=5 // pred_fallthru
      _
    %p292 = scmp.le.s32.totalorder 2, %s10
    // Predicated region
    $region37: #{tcn_block_forward.2} parent=5 // pred_check
      %p293 = pneg %p292
    $region38: #{tcn_block_forward.2} parent=5 // pred_check_branch
      %295 = sbr.rel (%p293) target = $region40
    $region39: #{tcn_block_forward.2} parent=5 // pred_region
      %s296 = ssub.s32 %s10, 2
      // Predicated region
      $region41: #{tcn_block_forward.2} parent=39 // pred_check
        %p297 = pneg %p86
      $region42: #{tcn_block_forward.2} parent=39 // pred_check_branch
        %299 = sbr.rel (%p297) target = $region44
      $region43: #{tcn_block_forward.2} parent=39 // pred_region
        %p300 = scmp.lt.s32.totalorder %s16, 1
        %s301 = scalar_select %p300, %s16, 1
        %s302 = smul.addr %s301, 4
        %s303 = scalar_lea.vmem %s2, %s302
      $region44: #{tcn_block_forward.2} parent=39 // pred_fallthru
        _
      // Predicated region
      $region45: #{tcn_block_forward.2} parent=39 // pred_check
        %p304 = pneg %p112
      $region46: #{tcn_block_forward.2} parent=39 // pred_check_branch
        %306 = sbr.rel (%p304) target = $region48
      $region47: #{tcn_block_forward.2} parent=39 // pred_region
        %p307 = scmp.lt.s32.totalorder %s16, 1
        %s308 = scalar_select %p307, %s16, 1
        %s309 = smul.addr %s308, 8
        %s310 = scalar_lea.vmem %s3, %s309
      $region48: #{tcn_block_forward.2} parent=39 // pred_fallthru
        _
    $region40: #{tcn_block_forward.2} parent=5 // pred_fallthru
      _
  $region6: #{tcn_block_forward.2} parent=0 // loop_footer
    %s14 = sadd.s32 1, %s10
  $region7: #{tcn_block_forward.2} parent=0 // loop_footer_branch
    %9 = sbr.rel target = $region3
  $region8: #{tcn_block_forward.2} parent=0 // loop_exit
    _

// kernel: tcn_block_forward.3
$region0: #{tcn_block_forward.3}
  #allocation0 [shape = 'u32[]', space=smem, size = 0x4, offset = 0x4, fixed_abs, tag = 'smem constant byte address 0x4 - core index']
  #allocation1 [shape = 'u32[144,128]{1,0:T(1,128)}', space=vmem, size = 0x12000, scoped, tag = 'internal scratch']
  %s0 = inlined_call_operand.vmem [shape: bf16[2,8,128], index: 0, kind: input, shape index: {}]
  %s1 = inlined_call_operand.vmem [shape: f32[8,1], index: 1, kind: input, shape index: {}]
  %s2 = inlined_call_operand.vmem [shape: f32[8,1], index: 2, kind: input, shape index: {}]
  %s3 = inlined_call_operand.hbm [shape: f32[2,8,128], index: 3, kind: output, shape index: {}]
  %s4 = sld [smem:[#allocation0]]
  $region45: #{tcn_block_forward.3} parent=0
    _
  %s6 = ssub.s32 1, %s4
  %s7 = scalar_select 0, %s6, %s4
  $region1: #{tcn_block_forward.3} parent=0
    #allocation2 [shape = 'u8[8192]{0}', space=vmem, size = 0x2000, scoped, tag = 'output window, operand 0']
    #allocation3 [shape = 's32[2]{0}', space=sflag, size = 0x8, scoped, tag = 'scoped memory for tcn_block_forward.3']
    %8 = vsyncpa [#allocation3], 0
    %s9 = scalar_lea.sflag [#allocation3], 1
    %10 = vsyncpa %s9, 0
    loop: start=0, step=1, limit=4
    $region2: #{tcn_block_forward.3} parent=1 // loop_pre_header
      _
    $region3: #{tcn_block_forward.3} parent=1 // loop_header
      %s12 = sphi 0, %s16
      %p13 = scmp.ge.s32.totalorder %s12, 4
      %s19 = sphi 0, %s31
      %s20 = sphi 0, %s27
      %s21 = sphi 0, %s19
      %s22 = sphi 0, %s20
      %s23 = sphi 0, %s21
      %s24 = sphi 0, %s22
      %s36 = sphi 0, %s38
      %s39 = sphi 0, %s36
      %s40 = sphi 0, %s39
      %s56 = sphi 0, %s40
      %s60 = sphi 0, %s60
      %s62 = sphi 0, %s60
      %s63 = sphi 0, %s62
      %s77 = sphi 0, %s63
      %s81 = sphi 0, %s81
      %s83 = sphi 0, %s81
      %s84 = sphi 0, %s83
      %s98 = sphi 0, %s84
      %s106 = sphi 0, %s108
      %s109 = sphi 0, %s106
      %s110 = sphi 0, %s109
      %s126 = sphi 0, %s110
    $region4: #{tcn_block_forward.3} parent=1 // loop_header_branch
      %15 = sbr.rel (%p13) target = $region8
    $region5: #{tcn_block_forward.3} parent=1 // loop_body
      %s17 = ssub.s32 %s12, 1
      %s18 = ssub.s32 %s12, 2
      %s25 = sadd.s32 1, %s20
      %p26 = scmp.ge.s32.totalorder %s25, 1
      %s27 = scalar_select %p26, 0, %s25
      %s28 = sadd.s32 1, %s19
      %s29 = scalar_select %p26, %s28, %s19
      %p30 = scmp.ge.s32.totalorder %s29, 2
      %s31 = scalar_select %p30, 0, %s29
      %s32 = ssub.s32 %s19, %s31
      %s33 = ssub.s32 %s20, %s27
      %s34 = sor.u32 %s32, %s33
      %p35 = scmp.eq.s32.totalorder %s34, 0
      %s37 = sadd.s32 %s36, 1
      %s38 = scalar_select %p35, %s36, %s37
      %p41 = pneg %p35
      %p42 = scmp.eq.s32.totalorder %s12, 1
      %p43 = por %p41, %p42
      %p44 = scmp.ne.s32.totalorder %s36, %s39
      %p45 = scmp.eq.s32.totalorder %s12, 0
      %p46 = por %p44, %p45
      %p47 = scmp.ne.s32.totalorder %s36, %s39
      %p48 = scmp.eq.s32.totalorder %s17, 1
      %p49 = por %p47, %p48
      %p50 = scmp.ne.s32.totalorder %s39, %s40
      %p51 = scmp.eq.s32.totalorder %s17, 0
      %p52 = por %p50, %p51
      %p53 = scmp.ne.s32.totalorder %s39, %s40
      %p54 = scmp.eq.s32.totalorder %s18, 1
      %p55 = por %p53, %p54
      %p57 = scmp.ne.s32.totalorder %s40, %s56
      %p58 = scmp.eq.s32.totalorder %s18, 0
      %p59 = por %p57, %p58
      %s61 = sadd.s32 %s60, 1
      %p64 = scmp.eq.s32.totalorder %s12, 1
      %p65 = scmp.ne.s32.totalorder %s60, %s62
      %p66 = scmp.eq.s32.totalorder %s12, 0
      %p67 = por %p65, %p66
      %p68 = scmp.ne.s32.totalorder %s60, %s62
      %p69 = scmp.eq.s32.totalorder %s17, 1
      %p70 = por %p68, %p69
      %p71 = scmp.ne.s32.totalorder %s62, %s63
      %p72 = scmp.eq.s32.totalorder %s17, 0
      %p73 = por %p71, %p72
      %p74 = scmp.ne.s32.totalorder %s62, %s63
      %p75 = scmp.eq.s32.totalorder %s18, 1
      %p76 = por %p74, %p75
      %p78 = scmp.ne.s32.totalorder %s63, %s77
      %p79 = scmp.eq.s32.totalorder %s18, 0
      %p80 = por %p78, %p79
      %s82 = sadd.s32 %s81, 1
      %p85 = scmp.eq.s32.totalorder %s12, 1
      %p86 = scmp.ne.s32.totalorder %s81, %s83
      %p87 = scmp.eq.s32.totalorder %s12, 0
      %p88 = por %p86, %p87
      %p89 = scmp.ne.s32.totalorder %s81, %s83
      %p90 = scmp.eq.s32.totalorder %s17, 1
      %p91 = por %p89, %p90
      %p92 = scmp.ne.s32.totalorder %s83, %s84
      %p93 = scmp.eq.s32.totalorder %s17, 0
      %p94 = por %p92, %p93
      %p95 = scmp.ne.s32.totalorder %s83, %s84
      %p96 = scmp.eq.s32.totalorder %s18, 1
      %p97 = por %p95, %p96
      %p99 = scmp.ne.s32.totalorder %s84, %s98
      %p100 = scmp.eq.s32.totalorder %s18, 0
      %p101 = por %p99, %p100
      %s102 = ssub.s32 %s19, %s31
      %s103 = ssub.s32 %s20, %s27
      %s104 = sor.u32 %s102, %s103
      %p105 = scmp.eq.s32.totalorder %s104, 0
      %s107 = sadd.s32 %s106, 1
      %s108 = scalar_select %p105, %s106, %s107
      %p111 = pneg %p105
      %p112 = scmp.eq.s32.totalorder %s12, 1
      %p113 = por %p111, %p112
      %p114 = scmp.ne.s32.totalorder %s106, %s109
      %p115 = scmp.eq.s32.totalorder %s12, 0
      %p116 = por %p114, %p115
      %p117 = scmp.ne.s32.totalorder %s106, %s109
      %p118 = scmp.eq.s32.totalorder %s17, 1
      %p119 = por %p117, %p118
      %p120 = scmp.ne.s32.totalorder %s109, %s110
      %p121 = scmp.eq.s32.totalorder %s17, 0
      %p122 = por %p120, %p121
      %p123 = scmp.ne.s32.totalorder %s109, %s110
      %p124 = scmp.eq.s32.totalorder %s18, 1
      %p125 = por %p123, %p124
      %p127 = scmp.ne.s32.totalorder %s110, %s126
      %p128 = scmp.eq.s32.totalorder %s18, 0
      %p129 = por %p127, %p128
      %p130 = scmp.le.s32.totalorder 1, %s12
      %p131 = scmp.lt.s32.totalorder %s12, 3
      %p132 = pnand %p130, %p131
      %p133 = pneg %p132
      // Predicated region
      $region9: #{tcn_block_forward.3} parent=5 // pred_check
        _
      $region10: #{tcn_block_forward.3} parent=5 // pred_check_branch
        %135 = sbr.rel (%p132) target = $region12
      $region11: #{tcn_block_forward.3} parent=5 // pred_region
        %s136 = ssub.s32 %s12, 1
        // Predicated region
        $region13: #{tcn_block_forward.3} parent=11 // pred_check
          %p137 = pneg %p73
        $region14: #{tcn_block_forward.3} parent=11 // pred_check_branch
          %139 = sbr.rel (%p137) target = $region16
        $region15: #{tcn_block_forward.3} parent=11 // pred_region
          _
        $region16: #{tcn_block_forward.3} parent=11 // pred_fallthru
          _
        // Predicated region
        $region17: #{tcn_block_forward.3} parent=11 // pred_check
          %p140 = pneg %p94
        $region18: #{tcn_block_forward.3} parent=11 // pred_check_branch
          %142 = sbr.rel (%p140) target = $region20
        $region19: #{tcn_block_forward.3} parent=11 // pred_region
          _
        $region20: #{tcn_block_forward.3} parent=11 // pred_fallthru
          _
      $region12: #{tcn_block_forward.3} parent=5 // pred_fallthru
        _
      %p143 = scmp.lt.s32.totalorder %s12, 2
      // Predicated region
      $region21: #{tcn_block_forward.3} parent=5 // pred_check
        %p144 = pneg %p143
      $region22: #{tcn_block_forward.3} parent=5 // pred_check_branch
        %146 = sbr.rel (%p144) target = $region24
      $region23: #{tcn_block_forward.3} parent=5 // pred_region
        // Predicated region
        $region25: #{tcn_block_forward.3} parent=23 // pred_check
          %p147 = pneg %p46
        $region26: #{tcn_block_forward.3} parent=23 // pred_check_branch
          %149 = sbr.rel (%p147) target = $region28
        $region27: #{tcn_block_forward.3} parent=23 // pred_region
          %p150 = scmp.lt.s32.totalorder %s19, 1
          %s151 = scalar_select %p150, %s19, 1
          %p152 = scmp.lt.s32.totalorder %s20, 0
          %s153 = scalar_select %p152, %s20, 0
          %s154 = sadd.s32 %s153, %s151
          %s155 = smul.addr %s154, 4
          %s156 = scalar_lea.vmem %s0, %s155
        $region28: #{tcn_block_forward.3} parent=23 // pred_fallthru
          _
      $region24: #{tcn_block_forward.3} parent=5 // pred_fallthru
        _
      %p157 = scmp.le.s32.totalorder 1, %s12
      %p158 = scmp.lt.s32.totalorder %s12, 3
      %p159 = pnand %p157, %p158
      %p160 = pneg %p159
      // Predicated region
      $region29: #{tcn_block_forward.3} parent=5 // pred_check
        _
      $region30: #{tcn_block_forward.3} parent=5 // pred_check_branch
        %162 = sbr.rel (%p159) target = $region32
      $region31: #{tcn_block_forward.3} parent=5 // pred_region
        %s163 = ssub.s32 %s12, 1
        %p164 = scmp.lt.s32.totalorder %s21, 1
        %s165 = scalar_select %p164, %s21, 1
        %p166 = scmp.lt.s32.totalorder %s22, 0
        %s167 = scalar_select %p166, %s22, 0
        %s168 = sadd.s32 %s167, %s165
        %s169 = smul.addr %s168, 4
        %s170 = scalar_lea.vmem %s0, %s169
        %p171 = pneg %p52
        %p172 = pneg %p49
        %p173 = pneg %p73
        %p174 = pneg %p70
        %p175 = pneg %p94
        %p176 = pneg %p91
        %p177 = pneg %p122
        %p178 = pneg %p119
        %s179 = sand.u32 %s109, 1
        %s180 = scalar_lea.sflag [#allocation3], %s179
        %s181 = sand.u32 %s109, 1
        %s182 = smul.addr %s181, 8
        %s183 = scalar_lea.vmem [#allocation2], %s182
        %p184 = scmp.lt.s32.totalorder %s21, 1
        %s185 = scalar_select %p184, %s21, 1
        %p186 = scmp.lt.s32.totalorder %s22, 0
        %s187 = scalar_select %p186, %s22, 0
        %s188 = sadd.s32 %s187, %s185
        %s189 = smul.addr %s188, 4
        %s190 = scalar_lea.vmem %s0, %s189
        %v191 = vld [vmem:[%s190] sm:$0xf]
        %v192 = vunpack.c.l.bf16 %v191
        %v193 = vld [vmem:[%s1] sm:$0xff]
        %195 = vset.pattern.permute.xlu0 0
        %196 = vperm.xlu0 %195, %v193
        %v197 = vpop.permute.xlu0 %196
        %v199 = vmul.f32 %v192, %v197
        %v200 = vld [vmem:[%s2] sm:$0xff]
        %202 = vset.pattern.permute.xlu0 0
        %203 = vperm.xlu0 %202, %v200
        %v204 = vpop.permute.xlu0 %203
        %v206 = vadd.f32 %v199, %v204
        %v207 = vmax.f32 %v206, 0.0
        %208 = vst [vmem:[%s183] sm:$0xff] %v207
        %s209 = sand.u32 %s109, 1
        %s210 = scalar_lea.sflag [#allocation3], %s209
        %s211 = sand.u32 %s109, 1
        %s212 = smul.addr %s211, 8
        %s213 = scalar_lea.vmem [#allocation2], %s212
        // Predicated region
        $region33: #{tcn_block_forward.3} parent=31 // pred_check
          %p214 = pneg %p119
        $region34: #{tcn_block_forward.3} parent=31 // pred_check_branch
          %216 = sbr.rel (%p214) target = $region36
        $region35: #{tcn_block_forward.3} parent=31 // pred_region
          %s218 = ssub.s32 128, 128
          %219 = vsyncadd %s210, %s218
          %s220 = sadd.s32 %s22, %s21
          %s221 = smul.addr %s220, 128
          %s222 = scalar_lea.hbm %s3, %s221
          %s224 = sshll.u32 %s213, 4
          %s225 = int_to_ptr.vmem [resolvable:$true] %s224
          %227 = dma.vmem_to_hbm [thread:$0]  %s225, 128, %s222, %s210
        $region36: #{tcn_block_forward.3} parent=31 // pred_fallthru
          _
      $region32: #{tcn_block_forward.3} parent=5 // pred_fallthru
        _
      %p228 = scmp.le.s32.totalorder 2, %s12
      // Predicated region
      $region37: #{tcn_block_forward.3} parent=5 // pred_check
        %p229 = pneg %p228
      $region38: #{tcn_block_forward.3} parent=5 // pred_check_branch
        %231 = sbr.rel (%p229) target = $region40
      $region39: #{tcn_block_forward.3} parent=5 // pred_region
        %s232 = ssub.s32 %s12, 2
        // Predicated region
        $region41: #{tcn_block_forward.3} parent=39 // pred_check
          %p233 = pneg %p125
        $region42: #{tcn_block_forward.3} parent=39 // pred_check_branch
          %235 = sbr.rel (%p233) target = $region44
        $region43: #{tcn_block_forward.3} parent=39 // pred_region
          %s236 = sand.u32 %s110, 1
          %s237 = scalar_lea.sflag [#allocation3], %s236
          %s238 = sand.u32 %s110, 1
          %s239 = smul.addr %s238, 8
          %s240 = scalar_lea.vmem [#allocation2], %s239
          %241 = dma.done %s237, 128
        $region44: #{tcn_block_forward.3} parent=39 // pred_fallthru
          _
      $region40: #{tcn_block_forward.3} parent=5 // pred_fallthru
        _
    $region6: #{tcn_block_forward.3} parent=1 // loop_footer
      %s16 = sadd.s32 1, %s12
    $region7: #{tcn_block_forward.3} parent=1 // loop_footer_branch
      %11 = sbr.rel target = $region3
    $region8: #{tcn_block_forward.3} parent=1 // loop_exit
      _
    %242 = vsyncpa [#allocation3], 1
    %s243 = scalar_lea.sflag [#allocation3], 1
    %244 = vsyncpa %s243, 1

</llo_original>
